<compile_context>
chip_gen: v6e
topology: v6e:2x2x1
jax: 0.10.0
libtpu: 0.0.40
codegen_flags: <defaults>
</compile_context>

<pallas_src>
from typing import NamedTuple

import jax
import jax.numpy as jnp
from jax.experimental import pallas as pl
from jax.experimental.pallas import tpu as pltpu


def _round_up(x: int, m: int) -> int:
    return ((x + m - 1) // m) * m


class NetConfig(NamedTuple):
    """Static (hashable) config produced by prepare_params."""
    n_output: int        # un-padded output width (for the final slice)
    hidden_block: int    # hidden-dim chunk size processed per grid step
    compute_dtype: str   # dtype name the matmul operands are stored/cast to


# --------------------------------------------------------------------------
# Kernel: one batch tile x one hidden chunk per grid step.
# Grid = (batch_tiles, hidden_chunks); hidden axis is the reduction axis.
# --------------------------------------------------------------------------
def mlp_kernel(x_ref, w1_ref, b1_ref, w2_ref, b2_ref, o_ref, acc_ref):
    h_step = pl.program_id(1)

    @pl.when(h_step == 0)
    def _init():
        acc_ref[...] = jnp.zeros_like(acc_ref)

    # hidden chunk: relu(x @ W1[:, chunk] + b1[chunk])  (MXU matmul + VPU bias/relu)
    h = jnp.dot(x_ref[...], w1_ref[...], preferred_element_type=jnp.float32)
    h = jnp.maximum(h + b1_ref[...], 0.0)

    # accumulate this chunk's contribution to the output; casting h to the
    # weight dtype is a no-op for f32 weights and keeps the bf16 MXU fast path
    # for bf16 weights (always f32 accumulation).
    acc_ref[...] += jnp.dot(h.astype(w2_ref.dtype), w2_ref[...],
                            preferred_element_type=jnp.float32)

    @pl.when(h_step == pl.num_programs(1) - 1)
    def _finalize():
        o_ref[...] = (acc_ref[...] + b2_ref[...]).astype(o_ref.dtype)


# --------------------------------------------------------------------------
# One-time parameter preparation (padding / dtype cast happen here, NOT per call).
# --------------------------------------------------------------------------
def prepare_params(w1, b1, w2, b2, *, compute_dtype=jnp.float32,
                   max_hidden_block=2048):
    """Pack Linear weights for the kernel. Call once; reuse for every forward."""
    n_feature, n_hidden = w1.shape
    n_output = w2.shape[1]
    b1 = jnp.asarray(b1).reshape(1, n_hidden)
    b2 = jnp.asarray(b2).reshape(1, n_output)

    # Hidden-dim chunking so W1/W2 chunks stay VMEM-resident even for big layers.
    max_hidden_block = max(128, (int(max_hidden_block) // 128) * 128)
    if n_hidden <= max_hidden_block:
        th, h_pad = n_hidden, n_hidden                 # single full-width chunk
    else:
        n_chunks = pl.cdiv(n_hidden, max_hidden_block)
        th = _round_up(pl.cdiv(n_hidden, n_chunks), 128)
        h_pad = th * n_chunks

    # Lane-dense output padding only when the dim is big enough to matter;
    # tiny outputs (e.g. 4) use a full-dim block (cheap masked store) instead
    # of 32x inflated HBM write traffic.
    o_pad = n_output if n_output < 128 else _round_up(n_output, 128)

    cdt = jnp.dtype(compute_dtype)
    w1_p = jnp.pad(w1, ((0, 0), (0, h_pad - n_hidden))).astype(cdt)
    b1_p = jnp.pad(b1, ((0, 0), (0, h_pad - n_hidden))).astype(jnp.float32)
    w2_p = jnp.pad(w2, ((0, h_pad - n_hidden), (0, o_pad - n_output))).astype(cdt)
    b2_p = jnp.pad(b2, ((0, 0), (0, o_pad - n_output))).astype(jnp.float32)

    cfg = NetConfig(n_output=n_output, hidden_block=th, compute_dtype=cdt.name)
    return (w1_p, b1_p, w2_p, b2_p), cfg


# --------------------------------------------------------------------------
# Forward wrapper (jit-friendly; cfg is static).
# --------------------------------------------------------------------------
def net_forward(x, params, cfg: NetConfig):
    w1_p, b1_p, w2_p, b2_p = params
    batch, n_feature = x.shape
    if w1_p.shape[0] != n_feature:
        raise ValueError("x feature dim does not match the prepared W1")
    h_pad = w1_p.shape[1]
    o_pad = w2_p.shape[1]
    th = cfg.hidden_block
    n_h = h_pad // th
    cdt = jnp.dtype(cfg.compute_dtype)
    out_dtype = x.dtype

    # Batch tiling: >= 2 grid steps when possible (DMA pipelining + v7x
    # megacore sharding), minimal row padding, rows a multiple of 8 (sublane).
    n_b_target = max(2, pl.cdiv(batch, 512))
    tb = min(_round_up(pl.cdiv(batch, n_b_target), 8), _round_up(batch, 8))
    b_pad = _round_up(batch, tb)
    grid_b = b_pad // tb

    x_c = x.astype(cdt)
    if b_pad != batch:
        x_c = jnp.pad(x_c, ((0, b_pad - batch), (0, 0)))

    # Explicit VMEM budget (assume everything double-buffered; f32 accumulator).
    w_isz = cdt.itemsize
    out_isz = jnp.dtype(out_dtype).itemsize
    vmem_bytes = (
        2 * tb * n_feature * w_isz                       # x tile (dbl buffered)
        + 2 * tb * o_pad * out_isz                       # out tile
        + tb * o_pad * 4                                 # accumulator scratch
        + 2 * (n_feature * th + th * o_pad) * w_isz      # W1/W2 chunks
        + 2 * (th + o_pad) * 4                           # biases
    )
    vmem_limit = int(min(max(32 * 1024 * 1024, int(vmem_bytes * 1.4)),
                         112 * 1024 * 1024))

    flops = 2 * b_pad * h_pad * (n_feature + o_pad)
    bytes_accessed = (b_pad * n_feature * w_isz + b_pad * o_pad * out_isz
                      + (n_feature * h_pad + h_pad * o_pad) * w_isz
                      + (h_pad + o_pad) * 4)

    out_p = pl.pallas_call(
        mlp_kernel,
        out_shape=jax.ShapeDtypeStruct((b_pad, o_pad), out_dtype),
        grid_spec=pltpu.PrefetchScalarGridSpec(
            num_scalar_prefetch=0,
            grid=(grid_b, n_h),
            in_specs=[
                pl.BlockSpec((tb, n_feature), lambda i, h: (i, 0)),  # x tile
                pl.BlockSpec((n_feature, th), lambda i, h: (0, h)),  # W1 chunk
                pl.BlockSpec((1, th), lambda i, h: (0, h)),          # b1 chunk
                pl.BlockSpec((th, o_pad), lambda i, h: (h, 0)),      # W2 chunk
                pl.BlockSpec((1, o_pad), lambda i, h: (0, 0)),       # b2
            ],
            out_specs=pl.BlockSpec((tb, o_pad), lambda i, h: (i, 0)),
            scratch_shapes=[pltpu.VMEM((tb, o_pad), jnp.float32)],
        ),
        compiler_params=pltpu.CompilerParams(
            dimension_semantics=("parallel", "arbitrary"),
            vmem_limit_bytes=vmem_limit,
        ),
        cost_estimate=pl.CostEstimate(
            flops=int(flops), transcendentals=0,
            bytes_accessed=int(bytes_accessed)),
    )(x_c, w1_p, b1_p, w2_p, b2_p)

    if b_pad != batch or o_pad != cfg.n_output:
        out_p = out_p[:batch, :cfg.n_output]
    return out_p


def init_params(key, n_feature, n_hidden, n_output, dtype=jnp.float32):
    """Deterministic PyTorch-style init: U(-1/sqrt(fan_in), 1/sqrt(fan_in))."""
    k1, k2, k3, k4 = jax.random.split(key, 4)
    bound1 = 1.0 / jnp.sqrt(jnp.float32(n_feature))
    bound2 = 1.0 / jnp.sqrt(jnp.float32(n_hidden))
    w1 = jax.random.uniform(k1, (n_feature, n_hidden), dtype, -bound1, bound1)
    b1 = jax.random.uniform(k2, (n_hidden,), dtype, -bound1, bound1)
    w2 = jax.random.uniform(k3, (n_hidden, n_output), dtype, -bound2, bound2)
    b2 = jax.random.uniform(k4, (n_output,), dtype, -bound2, bound2)
    return w1, b1, w2, b2


if __name__ == "__main__":
    # Small shapes consistent with the PyTorch module's forward.
    n_feature, n_hidden, n_output = 16, 32, 4
    batch = 8

    key = jax.random.PRNGKey(0)
    kx, kp = jax.random.split(key)
    x = jax.random.normal(kx, (batch, n_feature), jnp.float32)
    w1, b1, w2, b2 = init_params(kp, n_feature, n_hidden, n_output)

    # Pure-JAX reference of the same forward pass (f32).
    ref = jnp.maximum(x @ w1 + b1[None, :], 0.0) @ w2 + b2[None, :]

    fwd = jax.jit(net_forward, static_argnums=2)

    # ---- f32 path: matches the PyTorch module numerics ----
    params32, cfg32 = prepare_params(w1, b1, w2, b2, compute_dtype=jnp.float32)
    out32 = jax.block_until_ready(fwd(x, params32, cfg32))
    assert out32.shape == (batch, n_output)
    assert jnp.allclose(out32, ref, atol=1e-5, rtol=1e-5)

    # ---- bf16 fast path: native-width MXU on v5e/v6e/v7x, f32 accumulation ----
    # (deliberate precision trade-off vs. the pure-f32 torch reference)
    params_bf, cfg_bf = prepare_params(w1, b1, w2, b2, compute_dtype=jnp.bfloat16)
    out_bf = jax.block_until_ready(fwd(x, params_bf, cfg_bf))
    assert out_bf.shape == (batch, n_output)
    assert jnp.allclose(out_bf, ref, atol=5e-2, rtol=5e-2)

    print("KERNEL_OK")
</pallas_src>

<mosaic_0001>
module attributes {stable_mosaic.version = 11 : i64} {
  func.func @mlp_kernel(%arg0: i32, %arg1: i32, %arg2: memref<8x16xf32, #tpu.memory_space<vmem>>, %arg3: memref<16x32xf32, #tpu.memory_space<vmem>>, %arg4: memref<1x32xf32, #tpu.memory_space<vmem>>, %arg5: memref<32x4xf32, #tpu.memory_space<vmem>>, %arg6: memref<1x4xf32, #tpu.memory_space<vmem>>, %arg7: memref<8x4xf32, #tpu.memory_space<vmem>>, %arg8: memref<8x4xf32, #tpu.memory_space<vmem>>) attributes {dimension_semantics = [#tpu.dimension_semantics<parallel>, #tpu.dimension_semantics<arbitrary>], iteration_bounds = array<i64: 1, 1>, scalar_prefetch = 0 : i64, scratch_operands = 1 : i64, tpu.core_type = #tpu.core_type<tc>, window_params = [{transform_indices = @transform_0, window_bounds = array<i64: 8, 16>}, {transform_indices = @transform_1, window_bounds = array<i64: 16, 32>}, {transform_indices = @transform_2, window_bounds = array<i64: 1, 32>}, {transform_indices = @transform_3, window_bounds = array<i64: 32, 4>}, {pipeline_mode = #tpu.pipeline_mode<synchronous>, transform_indices = @transform_4, window_bounds = array<i64: 1, 4>}, {transform_indices = @transform_5, window_bounds = array<i64: 8, 4>}]} {
    %c0_i32 = arith.constant 0 : i32
    %0 = arith.cmpi eq, %arg1, %c0_i32 : i32
    %1 = arith.extui %0 : i1 to i32
    %c0_i32_0 = arith.constant 0 : i32
    %2 = arith.cmpi ne, %1, %c0_i32_0 : i32
    scf.if %2 {
      %cst_16 = arith.constant 0.000000e+00 : f32
      %19 = vector.broadcast %cst_16 : f32 to vector<8x4xf32>
      %c0_17 = arith.constant 0 : index
      %c0_18 = arith.constant 0 : index
      %20 = vector.load %arg8[%c0_17, %c0_18] : memref<8x4xf32, #tpu.memory_space<vmem>>, vector<8x4xf32>
      tpu.vector_store %arg8[%c0_17, %c0_18], %19 {strides = array<i32>} : memref<8x4xf32, #tpu.memory_space<vmem>>, vector<8x4xf32>,
    } else {
    }
    %c0 = arith.constant 0 : index
    %c0_1 = arith.constant 0 : index
    %3 = vector.load %arg2[%c0, %c0_1] : memref<8x16xf32, #tpu.memory_space<vmem>>, vector<8x16xf32>
    %c0_2 = arith.constant 0 : index
    %c0_3 = arith.constant 0 : index
    %4 = vector.load %arg3[%c0_2, %c0_3] : memref<16x32xf32, #tpu.memory_space<vmem>>, vector<16x32xf32>
    %cst = arith.constant dense<0.000000e+00> : vector<8x32xf32>
    %5 = tpu.matmul %3, %4, %cst {dimension_numbers = #tpu.dot_dimension_numbers<[1], [0], [0], [1], [0, 0, 1, 1], [], []>} : vector<8x16xf32>, vector<16x32xf32>, vector<8x32xf32> -> vector<8x32xf32>
    %c0_4 = arith.constant 0 : index
    %c0_5 = arith.constant 0 : index
    %6 = vector.load %arg4[%c0_4, %c0_5] : memref<1x32xf32, #tpu.memory_space<vmem>>, vector<1x32xf32>
    %7 = vector.broadcast %6 : vector<1x32xf32> to vector<8x32xf32>
    %8 = arith.addf %5, %7 : vector<8x32xf32>
    %cst_6 = arith.constant 0.000000e+00 : f32
    %9 = vector.broadcast %cst_6 : f32 to vector<8x32xf32>
    %10 = arith.maximumf %8, %9 : vector<8x32xf32>
    %c0_7 = arith.constant 0 : index
    %c0_8 = arith.constant 0 : index
    %11 = vector.load %arg8[%c0_7, %c0_8] : memref<8x4xf32, #tpu.memory_space<vmem>>, vector<8x4xf32>
    %c0_9 = arith.constant 0 : index
    %c0_10 = arith.constant 0 : index
    %12 = vector.load %arg5[%c0_9, %c0_10] : memref<32x4xf32, #tpu.memory_space<vmem>>, vector<32x4xf32>
    %cst_11 = arith.constant dense<0.000000e+00> : vector<8x4xf32>
    %13 = tpu.matmul %10, %12, %cst_11 {dimension_numbers = #tpu.dot_dimension_numbers<[1], [0], [0], [1], [0, 0, 1, 1], [], []>} : vector<8x32xf32>, vector<32x4xf32>, vector<8x4xf32> -> vector<8x4xf32>
    %14 = arith.addf %11, %13 : vector<8x4xf32>
    %c0_12 = arith.constant 0 : index
    %c0_13 = arith.constant 0 : index
    %15 = vector.load %arg8[%c0_12, %c0_13] : memref<8x4xf32, #tpu.memory_space<vmem>>, vector<8x4xf32>
    tpu.vector_store %arg8[%c0_12, %c0_13], %14 {strides = array<i32>} : memref<8x4xf32, #tpu.memory_space<vmem>>, vector<8x4xf32>,
    %c0_i32_14 = arith.constant 0 : i32
    %16 = arith.cmpi eq, %arg1, %c0_i32_14 : i32
    %17 = arith.extui %16 : i1 to i32
    %c0_i32_15 = arith.constant 0 : i32
    %18 = arith.cmpi ne, %17, %c0_i32_15 : i32
    scf.if %18 {
      %c0_16 = arith.constant 0 : index
      %c0_17 = arith.constant 0 : index
      %19 = vector.load %arg8[%c0_16, %c0_17] : memref<8x4xf32, #tpu.memory_space<vmem>>, vector<8x4xf32>
      %c0_18 = arith.constant 0 : index
      %c0_19 = arith.constant 0 : index
      %20 = vector.load %arg6[%c0_18, %c0_19] : memref<1x4xf32, #tpu.memory_space<vmem>>, vector<1x4xf32>
      %21 = vector.broadcast %20 : vector<1x4xf32> to vector<8x4xf32>
      %22 = arith.addf %19, %21 : vector<8x4xf32>
      %c0_20 = arith.constant 0 : index
      %c0_21 = arith.constant 0 : index
      %23 = vector.load %arg7[%c0_20, %c0_21] : memref<8x4xf32, #tpu.memory_space<vmem>>, vector<8x4xf32>
      tpu.vector_store %arg7[%c0_20, %c0_21], %22 {strides = array<i32>} : memref<8x4xf32, #tpu.memory_space<vmem>>, vector<8x4xf32>,
    } else {
    }
    return
  }
  func.func @transform_0(%arg0: i32, %arg1: i32) -> (i32, i32) {
    %c0_i32 = arith.constant 0 : i32
    %c0_i32_0 = arith.constant 0 : i32
    return %arg0, %c0_i32 : i32, i32
  }
  func.func @transform_1(%arg0: i32, %arg1: i32) -> (i32, i32) {
    %c0_i32 = arith.constant 0 : i32
    %c0_i32_0 = arith.constant 0 : i32
    return %c0_i32, %arg1 : i32, i32
  }
  func.func @transform_2(%arg0: i32, %arg1: i32) -> (i32, i32) {
    %c0_i32 = arith.constant 0 : i32
    %c0_i32_0 = arith.constant 0 : i32
    return %c0_i32, %arg1 : i32, i32
  }
  func.func @transform_3(%arg0: i32, %arg1: i32) -> (i32, i32) {
    %c0_i32 = arith.constant 0 : i32
    %c0_i32_0 = arith.constant 0 : i32
    return %arg1, %c0_i32 : i32, i32
  }
  func.func @transform_4(%arg0: i32, %arg1: i32) -> (i32, i32) {
    %c0_i32 = arith.constant 0 : i32
    %c0_i32_0 = arith.constant 0 : i32
    %c0_i32_1 = arith.constant 0 : i32
    return %c0_i32, %c0_i32_0 : i32, i32
  }
  func.func @transform_5(%arg0: i32, %arg1: i32) -> (i32, i32) {
    %c0_i32 = arith.constant 0 : i32
    %c0_i32_0 = arith.constant 0 : i32
    return %arg0, %c0_i32 : i32, i32
  }
}

</mosaic_0001>

<llo_original>
// kernel: net_forward.1
$region0: #{net_forward.1}
  #allocation0 [shape = 'u32[]', space=smem, size = 0x4, offset = 0x4, fixed_abs, tag = 'smem constant byte address 0x4 - core index']
  #allocation1 [shape = 'u32[144,128]{1,0:T(1,128)}', space=vmem, size = 0x12000, scoped, tag = 'internal scratch']
  #allocation2 [shape = 'f32[8,4]{1,0:T(8,128)}', space=vmem, size = 0x1000, scoped, tag = 'scratch operand']
  %s0 = inlined_call_operand.vmem [shape: f32[8,16], index: 0, kind: input, shape index: {}]
  %s1 = inlined_call_operand.vmem [shape: f32[16,32], index: 1, kind: input, shape index: {}]
  %s2 = inlined_call_operand.vmem [shape: f32[1,32], index: 2, kind: input, shape index: {}]
  %s3 = inlined_call_operand.vmem [shape: f32[32,4], index: 3, kind: input, shape index: {}]
  %s4 = inlined_call_operand.vmem [shape: f32[1,4], index: 4, kind: input, shape index: {}]
  %s5 = inlined_call_operand.vmem [shape: f32[8,4], index: 5, kind: output, shape index: {}]
  %s6 = sld [smem:[#allocation0]]
  $region38: #{net_forward.1} parent=0
    _
  %s8 = ssub.s32 1, %s6
  %s9 = scalar_select 0, %s8, %s6
  // Predicated region
  $region2: #{net_forward.1} parent=0 // pred_check
    _
  $region3: #{net_forward.1} parent=0 // pred_check_branch
    %11 = sbr.rel (0) target = $region5
  $region4: #{net_forward.1} parent=0 // pred_region
    _
  $region5: #{net_forward.1} parent=0 // pred_fallthru
    _
  // Predicated region
  $region6: #{net_forward.1} parent=0 // pred_check
    _
  $region7: #{net_forward.1} parent=0 // pred_check_branch
    %13 = sbr.rel (0) target = $region9
  $region8: #{net_forward.1} parent=0 // pred_region
    _
  $region9: #{net_forward.1} parent=0 // pred_fallthru
    _
  // Predicated region
  $region10: #{net_forward.1} parent=0 // pred_check
    _
  $region11: #{net_forward.1} parent=0 // pred_check_branch
    %15 = sbr.rel (0) target = $region13
  $region12: #{net_forward.1} parent=0 // pred_region
    _
  $region13: #{net_forward.1} parent=0 // pred_fallthru
    _
  // Predicated region
  $region14: #{net_forward.1} parent=0 // pred_check
    _
  $region15: #{net_forward.1} parent=0 // pred_check_branch
    %17 = sbr.rel (0) target = $region17
  $region16: #{net_forward.1} parent=0 // pred_region
    _
  $region17: #{net_forward.1} parent=0 // pred_fallthru
    _
  // Predicated region
  $region18: #{net_forward.1} parent=0 // pred_check
    _
  $region19: #{net_forward.1} parent=0 // pred_check_branch
    %19 = sbr.rel (0) target = $region21
  $region20: #{net_forward.1} parent=0 // pred_region
    _
  $region21: #{net_forward.1} parent=0 // pred_fallthru
    _
  %p20 = scmp.eq.s32.totalorder 0, 0
  // Predicated region
  $region22: #{net_forward.1} parent=0 // pred_check
    %p21 = pneg %p20
  $region23: #{net_forward.1} parent=0 // pred_check_branch
    %23 = sbr.rel (%p21) target = $region25
  $region24: #{net_forward.1} parent=0 // pred_region
    %vm24 = vcmask 31744
    %25 = vst.msk [vmem:[#allocation2] sm:$0xff] %vm24, 0.0
  $region25: #{net_forward.1} parent=0 // pred_fallthru
    _
  %v26 = vld [vmem:[%s0] sm:$0xff]
  %v27 = vld [vmem:[%s1] sm:$0xff]
  %v28 = vld [vmem:[%s1 + $0x8] sm:$0xff]
  %v29 = vld [vmem:[%s2] sm:$0x1]
  %v31 = vlaneseq
  %v32 = vshrl.u32 %v31, 7
  %v33 = vsub.s32 0, %v32
  %v34 = vrot.slane %v29, %v33
  %vm36 = vcmask 130048
  %v38 = vsel %vm36, %v26, 0
  %40 = vmatprep.subr.mxu0 0.0
  %41 = vmatpush1.msra.mxu0 0.0
  %42 = vmatprep.subr.mxu0 0.0
  %43 = vmatpush1.msra.mxu0 0.0
  %44 = vmatprep.subr.mxu0 0.0
  %45 = vmatpush1.msra.mxu0 0.0
  %46 = vmatprep.subr.mxu0 0.0
  %47 = vmatpush1.msra.mxu0 0.0
  %48 = vmatprep.subr.mxu0 0.0
  %49 = vmatpush1.msra.mxu0 0.0
  %50 = vmatprep.subr.mxu0 0.0
  %51 = vmatpush1.msra.mxu0 0.0
  %52 = vmatprep.subr.mxu0 0.0
  %53 = vmatpush1.msra.mxu0 0.0
  %54 = vmatprep.subr.mxu0 0.0
  %55 = vmatpush1.msra.mxu0 0.0
  %56 = vmatprep.subr.mxu0 0.0
  %57 = vmatpush1.msra.mxu0 0.0
  %58 = vmatprep.subr.mxu0 0.0
  %59 = vmatpush1.msra.mxu0 0.0
  %60 = vmatprep.subr.mxu0 0.0
  %61 = vmatpush1.msra.mxu0 0.0
  %62 = vmatprep.subr.mxu0 0.0
  %63 = vmatpush1.msra.mxu0 0.0
  %64 = vmatprep.subr.mxu0 0.0
  %65 = vmatpush1.msra.mxu0 0.0
  %66 = vmatprep.subr.mxu0 0.0
  %67 = vmatpush1.msra.mxu0 0.0
  %68 = vmatprep.subr.mxu0 0.0
  %69 = vmatpush1.msra.mxu0 %v28
  %70 = vmatprep.subr.mxu0 0.0
  %71 = vmatpush1.msra.mxu0 %v27
  %72 = vmatprep.subr.mxu0 0.0
  %73 = vmatpush2.msra.mxu0 0.0
  %74 = vmatprep.subr.mxu0 0.0
  %75 = vmatpush2.msra.mxu0 0.0
  %76 = vmatprep.subr.mxu0 0.0
  %77 = vmatpush2.msra.mxu0 0.0
  %78 = vmatprep.subr.mxu0 0.0
  %79 = vmatpush2.msra.mxu0 0.0
  %80 = vmatprep.subr.mxu0 0.0
  %81 = vmatpush2.msra.mxu0 0.0
  %82 = vmatprep.subr.mxu0 0.0
  %83 = vmatpush2.msra.mxu0 0.0
  %84 = vmatprep.subr.mxu0 0.0
  %85 = vmatpush2.msra.mxu0 0.0
  %86 = vmatprep.subr.mxu0 0.0
  %87 = vmatpush2.msra.mxu0 0.0
  %88 = vmatprep.subr.mxu0 0.0
  %89 = vmatpush2.msra.mxu0 0.0
  %90 = vmatprep.subr.mxu0 0.0
  %91 = vmatpush2.msra.mxu0 0.0
  %92 = vmatprep.subr.mxu0 0.0
  %93 = vmatpush2.msra.mxu0 0.0
  %94 = vmatprep.subr.mxu0 0.0
  %95 = vmatpush2.msra.mxu0 0.0
  %96 = vmatprep.subr.mxu0 0.0
  %97 = vmatpush2.msra.mxu0 0.0
  %98 = vmatprep.subr.mxu0 0.0
  %99 = vmatpush2.msra.mxu0 0.0
  %100 = vmatprep.subr.mxu0 0.0
  %101 = vmatpush2.msra.mxu0 0.0
  %102 = vmatprep.subr.mxu0 0.0
  %103 = vmatpush2.msra.mxu0 0.0
  %104 = vmatprep.mubr.f32.mxu0 0.0
  %105 = vmatmul.mubr.f32.gmra.mxu0 %v38
  %v106 = vpop.f32.mrf.mxu0
  %v107 = vadd.f32 %v34, %v106
  %v108 = vpop.f32.mrf.mxu0
  %109 = vdwg.mxu0
  %v110 = vmax.f32 %v107, 0.0
  %v111 = vld [vmem:[#allocation2] sm:$0xff]
  %v112 = vld [vmem:[%s3] sm:$0xff]
  %v113 = vld [vmem:[%s3 + $0x8] sm:$0xff]
  %v114 = vld [vmem:[%s3 + $0x10] sm:$0xff]
  %v115 = vld [vmem:[%s3 + $0x18] sm:$0xff]
  %vm116 = vcmask 261120
  %v118 = vsel %vm116, %v110, 0
  %120 = vmatprep.subr.mxu0 0.0
  %121 = vmatpush1.msra.mxu0 0.0
  %122 = vmatprep.subr.mxu0 0.0
  %123 = vmatpush1.msra.mxu0 0.0
  %124 = vmatprep.subr.mxu0 0.0
  %125 = vmatpush1.msra.mxu0 0.0
  %126 = vmatprep.subr.mxu0 0.0
  %127 = vmatpush1.msra.mxu0 0.0
  %128 = vmatprep.subr.mxu0 0.0
  %129 = vmatpush1.msra.mxu0 0.0
  %130 = vmatprep.subr.mxu0 0.0
  %131 = vmatpush1.msra.mxu0 0.0
  %132 = vmatprep.subr.mxu0 0.0
  %133 = vmatpush1.msra.mxu0 0.0
  %134 = vmatprep.subr.mxu0 0.0
  %135 = vmatpush1.msra.mxu0 0.0
  %136 = vmatprep.subr.mxu0 0.0
  %137 = vmatpush1.msra.mxu0 0.0
  %138 = vmatprep.subr.mxu0 0.0
  %139 = vmatpush1.msra.mxu0 0.0
  %140 = vmatprep.subr.mxu0 0.0
  %141 = vmatpush1.msra.mxu0 0.0
  %142 = vmatprep.subr.mxu0 0.0
  %143 = vmatpush1.msra.mxu0 0.0
  %144 = vmatprep.subr.mxu0 0.0
  %145 = vmatpush1.msra.mxu0 %v115
  %146 = vmatprep.subr.mxu0 0.0
  %147 = vmatpush1.msra.mxu0 %v114
  %148 = vmatprep.subr.mxu0 0.0
  %149 = vmatpush1.msra.mxu0 %v113
  %150 = vmatprep.subr.mxu0 0.0
  %151 = vmatpush1.msra.mxu0 %v112
  %152 = vmatprep.subr.mxu0 0.0
  %153 = vmatpush2.msra.mxu0 0.0
  %154 = vmatprep.subr.mxu0 0.0
  %155 = vmatpush2.msra.mxu0 0.0
  %156 = vmatprep.subr.mxu0 0.0
  %157 = vmatpush2.msra.mxu0 0.0
  %158 = vmatprep.subr.mxu0 0.0
  %159 = vmatpush2.msra.mxu0 0.0
  %160 = vmatprep.subr.mxu0 0.0
  %161 = vmatpush2.msra.mxu0 0.0
  %162 = vmatprep.subr.mxu0 0.0
  %163 = vmatpush2.msra.mxu0 0.0
  %164 = vmatprep.subr.mxu0 0.0
  %165 = vmatpush2.msra.mxu0 0.0
  %166 = vmatprep.subr.mxu0 0.0
  %167 = vmatpush2.msra.mxu0 0.0
  %168 = vmatprep.subr.mxu0 0.0
  %169 = vmatpush2.msra.mxu0 0.0
  %170 = vmatprep.subr.mxu0 0.0
  %171 = vmatpush2.msra.mxu0 0.0
  %172 = vmatprep.subr.mxu0 0.0
  %173 = vmatpush2.msra.mxu0 0.0
  %174 = vmatprep.subr.mxu0 0.0
  %175 = vmatpush2.msra.mxu0 0.0
  %176 = vmatprep.subr.mxu0 0.0
  %177 = vmatpush2.msra.mxu0 0.0
  %178 = vmatprep.subr.mxu0 0.0
  %179 = vmatpush2.msra.mxu0 0.0
  %180 = vmatprep.subr.mxu0 0.0
  %181 = vmatpush2.msra.mxu0 0.0
  %182 = vmatprep.subr.mxu0 0.0
  %183 = vmatpush2.msra.mxu0 0.0
  %184 = vmatprep.mubr.f32.mxu0 0.0
  %185 = vmatmul.mubr.f32.gmra.mxu0 %v118
  %v186 = vpop.f32.mrf.mxu0
  %v187 = vadd.f32 0.0, %v186
  %v188 = vpop.f32.mrf.mxu0
  %189 = vdwg.mxu0
  %v190 = vadd.f32 %v111, %v187
  %vm191 = vcmask 31744
  %192 = vst.msk [vmem:[#allocation2] sm:$0xff] %vm191, %v190
  // Predicated region
  $region26: #{net_forward.1} parent=0 // pred_check
    %p193 = pneg %p20
  $region27: #{net_forward.1} parent=0 // pred_check_branch
    %195 = sbr.rel (%p193) target = $region29
  $region28: #{net_forward.1} parent=0 // pred_region
    %v196 = vld [vmem:[#allocation2] sm:$0xff]
    %v197 = vld [vmem:[%s4] sm:$0x1]
    %v199 = vlaneseq
    %v200 = vshrl.u32 %v199, 7
    %v201 = vsub.s32 0, %v200
    %v202 = vrot.slane %v197, %v201
    %v204 = vadd.f32 %v196, %v202
    %205 = vst.msk [vmem:[%s5] sm:$0xff] %vm191, %v204
  $region29: #{net_forward.1} parent=0 // pred_fallthru
    _
  // Predicated region
  $region30: #{net_forward.1} parent=0 // pred_check
    _
  $region31: #{net_forward.1} parent=0 // pred_check_branch
    %207 = sbr.rel (0) target = $region33
  $region32: #{net_forward.1} parent=0 // pred_region
    _
  $region33: #{net_forward.1} parent=0 // pred_fallthru
    _
  // Predicated region
  $region34: #{net_forward.1} parent=0 // pred_check
    _
  $region35: #{net_forward.1} parent=0 // pred_check_branch
    %209 = sbr.rel (0) target = $region37
  $region36: #{net_forward.1} parent=0 // pred_region
    _
  $region37: #{net_forward.1} parent=0 // pred_fallthru
    _

</llo_original>
